<compile_context>
chip_gen: v7x
topology: tpu7x:2x2x1
jax: 0.10.0
libtpu: 0.0.40
codegen_flags: <defaults>
</compile_context>

<pallas_src>
import functools
import math

import jax
import jax.numpy as jnp
import numpy as np
from jax.experimental import pallas as pl
from jax.experimental.pallas import tpu as pltpu

_UNIFORM_BITS = 24          # u = bits * 2**-24 is uniform on [0, 1)
_LANE = 128
_MAX_FUSED_SAMPLES = 16     # cap on the static per-block sample unroll
_TARGET_BLOCK_BYTES = 4 * 1024 * 1024


def _drop_path_kernel(bits_ref, x_ref, o_ref, *, bb, keep_threshold, inv_keep_prob):
    """One block = `bb` samples x (tr, L) features.

    keep  <=>  u >= drop_prob  <=>  bits >= ceil(drop_prob * 2**24)
    (identical to torch's floor(keep_prob + u) mask). The decision is pure
    scalar work; the VPU does one lane-dense broadcast multiply per sample.
    """
    b0 = pl.program_id(0) * bb
    for i in range(bb):  # bb is a small compile-time constant -> static unroll
        keep = bits_ref[b0 + i] >= keep_threshold
        scale = jnp.where(keep, inv_keep_prob, 0.0)
        o_ref[i] = (x_ref[i] * scale).astype(o_ref.dtype)


def sample_drop_bits(key, batch):
    """Per-sample raw uniform draws: int32 in [0, 2**24); u = bits * 2**-24 ~ U[0,1)."""
    return jax.random.randint(key, (batch,), 0, 1 << _UNIFORM_BITS, dtype=jnp.int32)


def _largest_divisor_leq(n, limit):
    limit = max(1, min(n, int(limit)))
    for d in range(limit, 0, -1):
        if n % d == 0:
            return d
    return 1


def drop_path_forward(x, drop_bits, drop_prob=0.0, training=False,
                      *, target_block_bytes=_TARGET_BLOCK_BYTES):
    """Pallas DropPath forward. `drop_bits` is the (B,) int32 output of sample_drop_bits."""
    if drop_prob == 0.0 or not training:
        # Identity fast path — same early-return as the torch module; no kernel needed.
        return x

    orig_shape = x.shape
    B = x.shape[0]
    F = int(np.prod(x.shape[1:])) if x.ndim > 1 else 1
    itemsize = jnp.dtype(x.dtype).itemsize

    # --- layout: flatten per-sample features, pad to a lane-dense width ------
    Fp = -(-F // _LANE) * _LANE
    x2 = x.reshape(B, F)
    if Fp != F:
        # TODO(synk): padding adds one extra HBM copy for feature counts that are
        # not a multiple of 128; fine for odd shapes, avoid on hot paths.
        x2 = jnp.pad(x2, ((0, 0), (0, Fp - F)))
    L = next(l for l in (1024, 512, 256, _LANE) if Fp % l == 0)
    R = Fp // L
    x3 = x2.reshape(B, R, L)

    # --- tiling: ~target-sized blocks; fuse samples when they are small ------
    row_bytes = L * itemsize
    per_sample_bytes = R * row_bytes
    if per_sample_bytes <= target_block_bytes:
        bb = _largest_divisor_leq(
            B, min(_MAX_FUSED_SAMPLES, target_block_bytes // per_sample_bytes))
        tr = R                                   # whole sample(s) per block
    else:
        bb = 1                                   # tile the row axis of one sample
        tr = max(16, (target_block_bytes // row_bytes) // 16 * 16)
        tr = min(R, tr)
    block_bytes = bb * tr * row_bytes
    grid = (B // bb, pl.cdiv(R, tr))

    keep_prob = 1.0 - drop_prob
    keep_threshold = int(math.ceil(drop_prob * (1 << _UNIFORM_BITS)))

    kernel = functools.partial(
        _drop_path_kernel, bb=bb,
        keep_threshold=keep_threshold, inv_keep_prob=float(1.0 / keep_prob))

    total = B * R * L
    cost = pl.CostEstimate(flops=total, transcendentals=0,
                           bytes_accessed=2 * total * itemsize + B * 4)

    out = pl.pallas_call(
        kernel,
        grid_spec=pltpu.PrefetchScalarGridSpec(
            num_scalar_prefetch=1,  # drop_bits -> SMEM before the grid runs
            grid=grid,
            in_specs=[pl.BlockSpec((bb, tr, L), lambda i, j, bits: (i, j, 0))],
            out_specs=pl.BlockSpec((bb, tr, L), lambda i, j, bits: (i, j, 0)),
        ),
        out_shape=jax.ShapeDtypeStruct((B, R, L), x.dtype),
        compiler_params=pltpu.CompilerParams(
            dimension_semantics=("parallel", "parallel"),
            vmem_limit_bytes=int(min(64 << 20, max(32 << 20, 6 * block_bytes))),
        ),
        cost_estimate=cost,
    )(drop_bits, x3)

    out = out.reshape(B, Fp)
    if Fp != F:
        out = out[:, :F]
    return out.reshape(orig_shape)


def drop_path_reference(x, drop_bits, drop_prob=0.0, training=False):
    """Pure-JAX mirror of the torch drop_path(), consuming the same raw draws."""
    if drop_prob == 0.0 or not training:
        return x
    keep_prob = 1.0 - drop_prob
    u = drop_bits.astype(jnp.float32) * (1.0 / (1 << _UNIFORM_BITS))  # U[0,1)
    shape = (x.shape[0],) + (1,) * (x.ndim - 1)
    mask = jnp.floor(keep_prob + u).reshape(shape).astype(x.dtype)    # {0,1}/sample
    return (x / keep_prob) * mask


if __name__ == "__main__":
    key = jax.random.PRNGKey(0)

    # --- case 1: (B, C, H, W) image-style input, lane-aligned feature count ---
    B1 = 2
    shape1 = (B1, 4, 16, 16)          # F = 1024 -> L = 1024, fused bb = 2
    k1x, k1b, key = jax.random.split(key, 3)
    x1 = jax.random.normal(k1x, shape1, jnp.float32)
    bits1 = sample_drop_bits(k1b, B1)

    out1 = jax.block_until_ready(
        drop_path_forward(x1, bits1, drop_prob=0.25, training=True))
    ref1 = drop_path_reference(x1, bits1, drop_prob=0.25, training=True)
    assert out1.shape == x1.shape
    np.testing.assert_allclose(np.asarray(out1), np.asarray(ref1), rtol=1e-5, atol=1e-6)

    # --- case 2: awkward (non-multiple-of-128) feature count -> padded path ---
    B2 = 3
    shape2 = (B2, 5, 37)              # F = 185 -> padded to 256
    k2x, k2b, key = jax.random.split(key, 3)
    x2 = jax.random.normal(k2x, shape2, jnp.float32)
    bits2 = sample_drop_bits(k2b, B2)

    out2 = jax.block_until_ready(
        drop_path_forward(x2, bits2, drop_prob=0.5, training=True))
    ref2 = drop_path_reference(x2, bits2, drop_prob=0.5, training=True)
    assert out2.shape == x2.shape
    np.testing.assert_allclose(np.asarray(out2), np.asarray(ref2), rtol=1e-5, atol=1e-6)

    # --- case 3: eval mode is an exact identity (torch early-return) ----------
    out_eval = jax.block_until_ready(
        drop_path_forward(x1, bits1, drop_prob=0.25, training=False))
    np.testing.assert_allclose(np.asarray(out_eval), np.asarray(x1), rtol=0, atol=0)

    print("KERNEL_OK")
</pallas_src>

<mosaic_0001>
module attributes {stable_mosaic.version = 11 : i64} {
  func.func @_drop_path_kernel(%arg0: i32, %arg1: i32, %arg2: memref<2xi32, #tpu.memory_space<smem>>, %arg3: memref<2x1x1024xf32, #tpu.memory_space<vmem>>, %arg4: memref<2x1x1024xf32, #tpu.memory_space<vmem>>) attributes {dimension_semantics = [#tpu.dimension_semantics<parallel>, #tpu.dimension_semantics<parallel>], iteration_bounds = array<i64: 1, 1>, scalar_prefetch = 1 : i64, scratch_operands = 0 : i64, tpu.core_type = #tpu.core_type<tc>, window_params = [{transform_indices = @transform_0, window_bounds = array<i64: 2, 1, 1024>}, {transform_indices = @transform_1, window_bounds = array<i64: 2, 1, 1024>}]} {
    %c2_i32 = arith.constant 2 : i32
    %0 = arith.muli %arg0, %c2_i32 : i32
    %c0_i32 = arith.constant 0 : i32
    %1 = arith.addi %0, %c0_i32 : i32
    %2 = arith.index_cast %1 : i32 to index
    %3 = memref.load %arg2[%2] : memref<2xi32, #tpu.memory_space<smem>>
    %c4194304_i32 = arith.constant 4194304 : i32
    %4 = arith.cmpi sge, %3, %c4194304_i32 : i32
    %cst = arith.constant 1.33333337 : f32
    %cst_0 = arith.constant 0.000000e+00 : f32
    %5 = arith.select %4, %cst, %cst_0 : f32
    %c0 = arith.constant 0 : index
    %c0_1 = arith.constant 0 : index
    %c0_2 = arith.constant 0 : index
    %6 = vector.load %arg3[%c0, %c0_1, %c0_2] : memref<2x1x1024xf32, #tpu.memory_space<vmem>>, vector<1x1x1024xf32>
    %7 = vector.shape_cast %6 : vector<1x1x1024xf32> to vector<1x1024xf32>
    %8 = vector.broadcast %5 : f32 to vector<1x1024xf32>
    %9 = arith.mulf %7, %8 : vector<1x1024xf32>
    %c0_3 = arith.constant 0 : index
    %c0_4 = arith.constant 0 : index
    %c0_5 = arith.constant 0 : index
    %10 = vector.load %arg4[%c0_3, %c0_4, %c0_5] : memref<2x1x1024xf32, #tpu.memory_space<vmem>>, vector<1x1x1024xf32>
    %11 = vector.shape_cast %10 : vector<1x1x1024xf32> to vector<1x1024xf32>
    %12 = vector.shape_cast %9 : vector<1x1024xf32> to vector<1x1x1024xf32>
    tpu.vector_store %arg4[%c0_3, %c0_4, %c0_5], %12 {strides = array<i32>} : memref<2x1x1024xf32, #tpu.memory_space<vmem>>, vector<1x1x1024xf32>,
    %c1_i32 = arith.constant 1 : i32
    %13 = arith.addi %0, %c1_i32 : i32
    %14 = arith.index_cast %13 : i32 to index
    %15 = memref.load %arg2[%14] : memref<2xi32, #tpu.memory_space<smem>>
    %c4194304_i32_6 = arith.constant 4194304 : i32
    %16 = arith.cmpi sge, %15, %c4194304_i32_6 : i32
    %cst_7 = arith.constant 1.33333337 : f32
    %cst_8 = arith.constant 0.000000e+00 : f32
    %17 = arith.select %16, %cst_7, %cst_8 : f32
    %c1 = arith.constant 1 : index
    %c0_9 = arith.constant 0 : index
    %c0_10 = arith.constant 0 : index
    %18 = vector.load %arg3[%c1, %c0_9, %c0_10] : memref<2x1x1024xf32, #tpu.memory_space<vmem>>, vector<1x1x1024xf32>
    %19 = vector.shape_cast %18 : vector<1x1x1024xf32> to vector<1x1024xf32>
    %20 = vector.broadcast %17 : f32 to vector<1x1024xf32>
    %21 = arith.mulf %19, %20 : vector<1x1024xf32>
    %c1_11 = arith.constant 1 : index
    %c0_12 = arith.constant 0 : index
    %c0_13 = arith.constant 0 : index
    %22 = vector.load %arg4[%c1_11, %c0_12, %c0_13] : memref<2x1x1024xf32, #tpu.memory_space<vmem>>, vector<1x1x1024xf32>
    %23 = vector.shape_cast %22 : vector<1x1x1024xf32> to vector<1x1024xf32>
    %24 = vector.shape_cast %21 : vector<1x1024xf32> to vector<1x1x1024xf32>
    tpu.vector_store %arg4[%c1_11, %c0_12, %c0_13], %24 {strides = array<i32>} : memref<2x1x1024xf32, #tpu.memory_space<vmem>>, vector<1x1x1024xf32>,
    return
  }
  func.func @transform_0(%arg0: i32, %arg1: i32, %arg2: memref<2xi32, #tpu.memory_space<smem>>) -> (i32, i32, i32) {
    %c0_i32 = arith.constant 0 : i32
    %c0_i32_0 = arith.constant 0 : i32
    return %arg0, %arg1, %c0_i32 : i32, i32, i32
  }
  func.func @transform_1(%arg0: i32, %arg1: i32, %arg2: memref<2xi32, #tpu.memory_space<smem>>) -> (i32, i32, i32) {
    %c0_i32 = arith.constant 0 : i32
    %c0_i32_0 = arith.constant 0 : i32
    return %arg0, %arg1, %c0_i32 : i32, i32, i32
  }
}

</mosaic_0001>

<llo_original>
// kernel: tpu_custom_call.1
$region0: #{tpu_custom_call.1}
  #allocation0 [shape = 'u32[]', space=smem, size = 0x4, offset = 0x4, fixed_abs, tag = 'smem constant byte address 0x4 - core index']
  #allocation1 [shape = 'u32[144,128]{1,0:T(1,128)}', space=vmem, size = 0x12000, scoped, tag = 'internal scratch']
  #allocation2 [shape = 's32[1]{0}', space=sflag, size = 0x4, scoped, tag = 'scoped memory for tpu_custom_call.1']
  #allocation3 [shape = 'u8[512]{0}', space=smem, size = 0x200, scoped, tag = 'prefetched SMEM operand 0']
  %s0 = inlined_call_operand.hbm [shape: s32[2], index: 0, kind: input, shape index: {}]
  %s1 = inlined_call_operand.hbm [shape: f32[2,1,1024], index: 1, kind: input, shape index: {}]
  %s2 = inlined_call_operand.hbm [shape: f32[2,1,1024], index: 2, kind: output, shape index: {}]
  %s3 = sld [smem:[#allocation0]]
  $region18: #{tpu_custom_call.1} parent=0
    _
  %s5 = ssub.s32 1, %s3
  %s6 = scalar_select 0, %s5, %s3
  %8 = dma.hbm_to_smem %s0, 16, [#allocation3], [#allocation2]
  %9 = dma.done [#allocation2], 16
  %10 = sfence
  $region1: #{tpu_custom_call.1} parent=0
    #allocation4 [shape = 'u8[8192]{0}', space=vmem, size = 0x2000, scoped, tag = 'input window, operand 1, single buffered']
    #allocation5 [shape = 's32[1]{0}', space=sflag, size = 0x4, scoped, tag = 'scoped memory for tpu_custom_call.1']
    #allocation6 [shape = 's32[1]{0}', space=sflag, size = 0x4, scoped, tag = 'scoped memory for tpu_custom_call.1']
    #allocation7 [shape = 'u8[8192]{0}', space=vmem, size = 0x2000, scoped, tag = 'output window, operand 0, single buffered']
    %11 = vsyncpa [#allocation5], 0
    %12 = vsyncpa [#allocation6], 0
    // Predicated region
    $region2: #{tpu_custom_call.1} parent=1 // pred_check
      _
    $region3: #{tpu_custom_call.1} parent=1 // pred_check_branch
      %14 = sbr.rel (0) target = $region5
    $region4: #{tpu_custom_call.1} parent=1 // pred_region
      %s16 = ssub.s32 256, 256
      %17 = vsyncadd [#allocation5], %s16
      %s18 = sshll.u32 [#allocation4], 4
      %s19 = int_to_ptr.vmem [resolvable:$true] %s18
      %24 = dma.hbm_to_vmem [thread:$0]  %s1, 256, %s19, [#allocation5], 128, 128, 8
    $region5: #{tpu_custom_call.1} parent=1 // pred_fallthru
      _
    // Predicated region
    $region6: #{tpu_custom_call.1} parent=1 // pred_check
      _
    $region7: #{tpu_custom_call.1} parent=1 // pred_check_branch
      %26 = sbr.rel (0) target = $region9
    $region8: #{tpu_custom_call.1} parent=1 // pred_region
      %27 = dma.done [#allocation5], 256
    $region9: #{tpu_custom_call.1} parent=1 // pred_fallthru
      _
    %s28 = smul.u32 0, 2
    %s29 = sld [smem:[#allocation3 + %s28]]
    %p30 = scmp.ge.s32.totalorder %s29, 4194304
    %s31 = scalar_select %p30, 1.3333334, 0.0
    %v32 = vld [vmem:[#allocation4] sm:$0xff]
    %v33 = vstv %s31
    %v34 = vmul.f32 %v32, %v33
    %35 = vst [vmem:[#allocation7] sm:$0xff] %v34
    %s36 = sadd.s32 %s28, 1
    %s37 = sld [smem:[#allocation3 + %s36]]
    %p38 = scmp.ge.s32.totalorder %s37, 4194304
    %s39 = scalar_select %p38, 1.3333334, 0.0
    %s40 = scalar_lea.vmem [#allocation4], 8
    %v41 = vld [vmem:[%s40] sm:$0xff]
    %v42 = vstv %s39
    %v43 = vmul.f32 %v41, %v42
    %s44 = scalar_lea.vmem [#allocation7], 8
    %45 = vst [vmem:[%s44] sm:$0xff] %v43
    // Predicated region
    $region10: #{tpu_custom_call.1} parent=1 // pred_check
      _
    $region11: #{tpu_custom_call.1} parent=1 // pred_check_branch
      %47 = sbr.rel (0) target = $region13
    $region12: #{tpu_custom_call.1} parent=1 // pred_region
      %s49 = ssub.s32 256, 256
      %50 = vsyncadd [#allocation6], %s49
      %s51 = sshll.u32 [#allocation7], 4
      %s52 = int_to_ptr.vmem [resolvable:$true] %s51
      %57 = dma.vmem_to_hbm [thread:$0]  %s52, 256, %s2, [#allocation6], 128, 128, 8
    $region13: #{tpu_custom_call.1} parent=1 // pred_fallthru
      _
    // Predicated region
    $region14: #{tpu_custom_call.1} parent=1 // pred_check
      _
    $region15: #{tpu_custom_call.1} parent=1 // pred_check_branch
      %59 = sbr.rel (0) target = $region17
    $region16: #{tpu_custom_call.1} parent=1 // pred_region
      %60 = dma.done [#allocation6], 256
    $region17: #{tpu_custom_call.1} parent=1 // pred_fallthru
      _
    %61 = vsyncpa [#allocation5], 1
    %62 = vsyncpa [#allocation6], 1

</llo_original>
